<compile_context>
chip_gen: v5e
topology: v5e:2x2
jax: 0.10.0
libtpu: 0.0.40
codegen_flags: <defaults>
</compile_context>

<pallas_src>
import jax
import jax.numpy as jnp
from jax import lax
from jax.experimental import pallas as pl
from jax.experimental.pallas import tpu as pltpu

OUTPUT_DIM = 256  # hard-coded in the reference module via torch.reshape(..., (256, 1))


def _round_up(x, m):
    return ((x + m - 1) // m) * m


def _balancing_kernel(x_ref, wt_ref, b_ref, v_ref, o_ref):
    # x_ref  : (TM, D)          batch tile (caller dtype, e.g. f32)
    # wt_ref : (256, D)         W transposed, MXU dtype (bf16)
    # b_ref  : (256, 1) f32     bias
    # v_ref  : (256, 1) f32     projection vector
    # o_ref  : (1, TM)  f32     lane-dense output row
    x_mxu = x_ref[...].astype(wt_ref.dtype)          # cast only at the MXU boundary
    # h_t[c, m] = sum_d W[d, c] * x[m, d]  — MXU matmul with f32 accumulation.
    h_t = lax.dot_general(
        wt_ref[...], x_mxu,
        dimension_numbers=(((1,), (1,)), ((), ())),
        preferred_element_type=jnp.float32,
    )                                                # (256, TM) f32
    h_t = jnp.tanh(h_t + b_ref[...])                 # bias + tanh in f32 (EUP)
    # v-projection: VPU multiply + sublane reduce — no second MXU matmul,
    # and the result is already lane-dense for a full-width store.
    o_ref[...] = jnp.sum(h_t * v_ref[...], axis=0, keepdims=True).astype(o_ref.dtype)


def balancing_forward(x, W, b, v, *, tile_m=512, mxu_dtype=jnp.bfloat16):
    """x: (B, D); W: (D, 256); b, v: (256,). Returns (B, 1) float32."""
    B, D = x.shape
    assert W.shape == (D, OUTPUT_DIM)
    assert b.shape == (OUTPUT_DIM,)
    assert v.shape == (OUTPUT_DIM,)

    # Effective batch tile:
    #  - if one tile covers the whole (8-aligned) batch, use that;
    #  - otherwise use tile_m rounded to a multiple of 128 so the multi-tile,
    #    lane-dense output blocks satisfy the (8, 128) constraint.
    tm_single = _round_up(B, 8)
    tm = tm_single if tm_single <= tile_m else _round_up(tile_m, 128)
    grid_m = pl.cdiv(B, tm)
    B_pad = grid_m * tm
    if B_pad != B:
        x = jnp.pad(x, ((0, B_pad - B), (0, 0)))

    wt = jnp.asarray(W, dtype=mxu_dtype).T                        # (256, D)
    b_col = jnp.asarray(b, jnp.float32).reshape(OUTPUT_DIM, 1)
    v_col = jnp.asarray(v, jnp.float32).reshape(OUTPUT_DIM, 1)

    out_row = pl.pallas_call(
        _balancing_kernel,
        out_shape=jax.ShapeDtypeStruct((1, B_pad), jnp.float32),
        grid_spec=pltpu.PrefetchScalarGridSpec(
            num_scalar_prefetch=0,
            grid=(grid_m,),
            in_specs=[
                pl.BlockSpec((tm, D), lambda i: (i, 0)),             # x tile
                pl.BlockSpec((OUTPUT_DIM, D), lambda i: (0, 0)),     # W^T (resident)
                pl.BlockSpec((OUTPUT_DIM, 1), lambda i: (0, 0)),     # b
                pl.BlockSpec((OUTPUT_DIM, 1), lambda i: (0, 0)),     # v
            ],
            out_specs=pl.BlockSpec((1, tm), lambda i: (0, i)),       # lane-dense
        ),
        compiler_params=pltpu.CompilerParams(
            dimension_semantics=("parallel",),
            vmem_limit_bytes=48 * 1024 * 1024,  # headroom under v7x's 64 MiB
        ),
    )(x, wt, b_col, v_col)

    return out_row[0, :B].reshape(B, 1)


def balancing_reference(x, W, b, v, *, mxu_dtype=jnp.bfloat16):
    # Same math / casts in plain jnp for the correctness check.
    h = jnp.matmul(x.astype(mxu_dtype), W.astype(mxu_dtype),
                   preferred_element_type=jnp.float32)
    h = jnp.tanh(h + b.astype(jnp.float32))
    return jnp.matmul(h, v.astype(jnp.float32).reshape(OUTPUT_DIM, 1))


if __name__ == "__main__":
    key = jax.random.PRNGKey(0)
    k_x, k_w, k_b, k_v = jax.random.split(key, 4)

    batch = 16
    input_dim = 32

    x = jax.random.normal(k_x, (batch, input_dim), dtype=jnp.float32)
    # The module draws W ~ N(0,1) and zero-inits b, v; non-zero b / v are used
    # here so the bias add and the second projection are exercised numerically.
    W = jax.random.normal(k_w, (input_dim, OUTPUT_DIM), dtype=jnp.float32)
    b = 0.1 * jax.random.normal(k_b, (OUTPUT_DIM,), dtype=jnp.float32)
    v = jax.random.normal(k_v, (OUTPUT_DIM,), dtype=jnp.float32)

    out = balancing_forward(x, W, b, v)
    out = jax.block_until_ready(out)

    ref = balancing_reference(x, W, b, v)
    assert out.shape == (batch, 1)
    assert jnp.allclose(out, ref, atol=1e-2, rtol=1e-2), "mismatch vs reference"

    print("KERNEL_OK")
</pallas_src>

<mosaic_0001>
module attributes {stable_mosaic.version = 11 : i64} {
  func.func @_balancing_kernel(%arg0: i32, %arg1: memref<16x32xf32, #tpu.memory_space<vmem>>, %arg2: memref<256x32xbf16, #tpu.memory_space<vmem>>, %arg3: memref<256x1xf32, #tpu.memory_space<vmem>>, %arg4: memref<256x1xf32, #tpu.memory_space<vmem>>, %arg5: memref<1x16xf32, #tpu.memory_space<vmem>>) attributes {dimension_semantics = [#tpu.dimension_semantics<parallel>], iteration_bounds = array<i64: 1>, scalar_prefetch = 0 : i64, scratch_operands = 0 : i64, tpu.core_type = #tpu.core_type<tc>, window_params = [{transform_indices = @transform_0, window_bounds = array<i64: 16, 32>}, {pipeline_mode = #tpu.pipeline_mode<synchronous>, transform_indices = @transform_1, window_bounds = array<i64: 256, 32>}, {pipeline_mode = #tpu.pipeline_mode<synchronous>, transform_indices = @transform_2, window_bounds = array<i64: 256, 1>}, {pipeline_mode = #tpu.pipeline_mode<synchronous>, transform_indices = @transform_3, window_bounds = array<i64: 256, 1>}, {transform_indices = @transform_4, window_bounds = array<i64: 1, 16>}]} {
    %c0 = arith.constant 0 : index
    %c0_0 = arith.constant 0 : index
    %0 = vector.load %arg1[%c0, %c0_0] : memref<16x32xf32, #tpu.memory_space<vmem>>, vector<16x32xf32>
    %1 = arith.truncf %0 : vector<16x32xf32> to vector<16x32xbf16>
    %c0_1 = arith.constant 0 : index
    %c0_2 = arith.constant 0 : index
    %2 = vector.load %arg2[%c0_1, %c0_2] : memref<256x32xbf16, #tpu.memory_space<vmem>>, vector<256x32xbf16>
    %cst = arith.constant dense<0.000000e+00> : vector<256x16xf32>
    %3 = tpu.matmul %2, %1, %cst {dimension_numbers = #tpu.dot_dimension_numbers<[1], [1], [0], [0], [0, 0, 1, 0], [], []>} : vector<256x32xbf16>, vector<16x32xbf16>, vector<256x16xf32> -> vector<256x16xf32>
    %c0_3 = arith.constant 0 : index
    %c0_4 = arith.constant 0 : index
    %4 = vector.load %arg3[%c0_3, %c0_4] : memref<256x1xf32, #tpu.memory_space<vmem>>, vector<256x1xf32>
    %5 = vector.broadcast %4 : vector<256x1xf32> to vector<256x16xf32>
    %6 = arith.addf %3, %5 : vector<256x16xf32>
    %7 = math.tanh %6 : vector<256x16xf32>
    %c0_5 = arith.constant 0 : index
    %c0_6 = arith.constant 0 : index
    %8 = vector.load %arg4[%c0_5, %c0_6] : memref<256x1xf32, #tpu.memory_space<vmem>>, vector<256x1xf32>
    %9 = vector.broadcast %8 : vector<256x1xf32> to vector<256x16xf32>
    %10 = arith.mulf %7, %9 : vector<256x16xf32>
    %cst_7 = arith.constant dense<0.000000e+00> : vector<16xf32>
    %11 = vector.multi_reduction <add>, %10, %cst_7 [0] : vector<256x16xf32> to vector<16xf32>
    %12 = vector.shape_cast %11 : vector<16xf32> to vector<1x16xf32>
    %c0_8 = arith.constant 0 : index
    %c0_9 = arith.constant 0 : index
    %13 = vector.load %arg5[%c0_8, %c0_9] : memref<1x16xf32, #tpu.memory_space<vmem>>, vector<1x16xf32>
    tpu.vector_store %arg5[%c0_8, %c0_9], %12 {strides = array<i32>} : memref<1x16xf32, #tpu.memory_space<vmem>>, vector<1x16xf32>,
    return
  }
  func.func @transform_0(%arg0: i32) -> (i32, i32) {
    %c0_i32 = arith.constant 0 : i32
    %c0_i32_0 = arith.constant 0 : i32
    return %arg0, %c0_i32 : i32, i32
  }
  func.func @transform_1(%arg0: i32) -> (i32, i32) {
    %c0_i32 = arith.constant 0 : i32
    %c0_i32_0 = arith.constant 0 : i32
    %c0_i32_1 = arith.constant 0 : i32
    return %c0_i32, %c0_i32_0 : i32, i32
  }
  func.func @transform_2(%arg0: i32) -> (i32, i32) {
    %c0_i32 = arith.constant 0 : i32
    %c0_i32_0 = arith.constant 0 : i32
    %c0_i32_1 = arith.constant 0 : i32
    return %c0_i32, %c0_i32_0 : i32, i32
  }
  func.func @transform_3(%arg0: i32) -> (i32, i32) {
    %c0_i32 = arith.constant 0 : i32
    %c0_i32_0 = arith.constant 0 : i32
    %c0_i32_1 = arith.constant 0 : i32
    return %c0_i32, %c0_i32_0 : i32, i32
  }
  func.func @transform_4(%arg0: i32) -> (i32, i32) {
    %c0_i32 = arith.constant 0 : i32
    %c0_i32_0 = arith.constant 0 : i32
    return %c0_i32, %arg0 : i32, i32
  }
}

</mosaic_0001>

<llo_original>
// kernel: tpu_custom_call.1
$region0: #{tpu_custom_call.1}
  #allocation0 [shape = 'u32[]', space=smem, size = 0x4, offset = 0x4, fixed_abs, tag = 'smem constant byte address 0x4 - core index']
  #allocation1 [shape = 'u32[72,128]{1,0:T(1,128)}', space=vmem, size = 0x9000, scoped, tag = 'internal scratch']
  %s0 = inlined_call_operand.vmem [shape: f32[16,32], index: 0, kind: input, shape index: {}]
  %s1 = inlined_call_operand.vmem [shape: bf16[256,32], index: 1, kind: input, shape index: {}]
  %s2 = inlined_call_operand.vmem [shape: f32[256,1], index: 2, kind: input, shape index: {}]
  %s3 = inlined_call_operand.vmem [shape: f32[256,1], index: 3, kind: input, shape index: {}]
  %s4 = inlined_call_operand.hbm [shape: f32[1,16], index: 4, kind: output, shape index: {}]
  %s5 = sld [smem:[#allocation0]]
  $region26: #{tpu_custom_call.1} parent=0
    _
  %s7 = ssub.s32 1, %s5
  %s8 = scalar_select 0, %s7, %s5
  $region1: #{tpu_custom_call.1} parent=0
    #allocation2 [shape = 'u8[512]{0}', space=vmem, size = 0x400, scoped, tag = 'output window, operand 0, single buffered']
    #allocation3 [shape = 's32[1]{0}', space=sflag, size = 0x4, scoped, tag = 'scoped memory for tpu_custom_call.1']
    %9 = vsyncpa [#allocation3], 0
    // Predicated region
    $region2: #{tpu_custom_call.1} parent=1 // pred_check
      _
    $region3: #{tpu_custom_call.1} parent=1 // pred_check_branch
      %11 = sbr.rel (0) target = $region5
    $region4: #{tpu_custom_call.1} parent=1 // pred_region
      _
    $region5: #{tpu_custom_call.1} parent=1 // pred_fallthru
      _
    // Predicated region
    $region6: #{tpu_custom_call.1} parent=1 // pred_check
      _
    $region7: #{tpu_custom_call.1} parent=1 // pred_check_branch
      %13 = sbr.rel (0) target = $region9
    $region8: #{tpu_custom_call.1} parent=1 // pred_region
      _
    $region9: #{tpu_custom_call.1} parent=1 // pred_fallthru
      _
    // Predicated region
    $region10: #{tpu_custom_call.1} parent=1 // pred_check
      _
    $region11: #{tpu_custom_call.1} parent=1 // pred_check_branch
      %15 = sbr.rel (0) target = $region13
    $region12: #{tpu_custom_call.1} parent=1 // pred_region
      _
    $region13: #{tpu_custom_call.1} parent=1 // pred_fallthru
      _
    // Predicated region
    $region14: #{tpu_custom_call.1} parent=1 // pred_check
      _
    $region15: #{tpu_custom_call.1} parent=1 // pred_check_branch
      %17 = sbr.rel (0) target = $region17
    $region16: #{tpu_custom_call.1} parent=1 // pred_region
      _
    $region17: #{tpu_custom_call.1} parent=1 // pred_fallthru
      _
    %v19 = vld [vmem:[%s0] sm:$0xff]
    %v20 = vld [vmem:[%s0 + $0x8] sm:$0xff]
    %v21 = vpack.c.bf16 %v20, %v19
    %v22 = vld [vmem:[%s1] sm:$0xf]
    %v23 = vld [vmem:[%s1 + $0x4] sm:$0xf]
    %v24 = vld [vmem:[%s1 + $0x8] sm:$0xf]
    %v25 = vld [vmem:[%s1 + $0xc] sm:$0xf]
    %v26 = vld [vmem:[%s1 + $0x10] sm:$0xf]
    %v27 = vld [vmem:[%s1 + $0x14] sm:$0xf]
    %v28 = vld [vmem:[%s1 + $0x18] sm:$0xf]
    %v29 = vld [vmem:[%s1 + $0x1c] sm:$0xf]
    %v30 = vld [vmem:[%s1 + $0x20] sm:$0xf]
    %v31 = vld [vmem:[%s1 + $0x24] sm:$0xf]
    %v32 = vld [vmem:[%s1 + $0x28] sm:$0xf]
    %v33 = vld [vmem:[%s1 + $0x2c] sm:$0xf]
    %v34 = vld [vmem:[%s1 + $0x30] sm:$0xf]
    %v35 = vld [vmem:[%s1 + $0x34] sm:$0xf]
    %v36 = vld [vmem:[%s1 + $0x38] sm:$0xf]
    %v37 = vld [vmem:[%s1 + $0x3c] sm:$0xf]
    %v38 = vld [vmem:[%s1 + $0x40] sm:$0xf]
    %v39 = vld [vmem:[%s1 + $0x44] sm:$0xf]
    %v40 = vld [vmem:[%s1 + $0x48] sm:$0xf]
    %v41 = vld [vmem:[%s1 + $0x4c] sm:$0xf]
    %v42 = vld [vmem:[%s1 + $0x50] sm:$0xf]
    %v43 = vld [vmem:[%s1 + $0x54] sm:$0xf]
    %v44 = vld [vmem:[%s1 + $0x58] sm:$0xf]
    %v45 = vld [vmem:[%s1 + $0x5c] sm:$0xf]
    %v46 = vld [vmem:[%s1 + $0x60] sm:$0xf]
    %v47 = vld [vmem:[%s1 + $0x64] sm:$0xf]
    %v48 = vld [vmem:[%s1 + $0x68] sm:$0xf]
    %v49 = vld [vmem:[%s1 + $0x6c] sm:$0xf]
    %v50 = vld [vmem:[%s1 + $0x70] sm:$0xf]
    %v51 = vld [vmem:[%s1 + $0x74] sm:$0xf]
    %v52 = vld [vmem:[%s1 + $0x78] sm:$0xf]
    %v53 = vld [vmem:[%s1 + $0x7c] sm:$0xf]
    %v54 = vld [vmem:[%s2] sm:$0xff]
    %v55 = vld [vmem:[%s2 + $0x8] sm:$0xff]
    %v56 = vld [vmem:[%s2 + $0x10] sm:$0xff]
    %v57 = vld [vmem:[%s2 + $0x18] sm:$0xff]
    %v58 = vld [vmem:[%s2 + $0x20] sm:$0xff]
    %v59 = vld [vmem:[%s2 + $0x28] sm:$0xff]
    %v60 = vld [vmem:[%s2 + $0x30] sm:$0xff]
    %v61 = vld [vmem:[%s2 + $0x38] sm:$0xff]
    %v62 = vld [vmem:[%s2 + $0x40] sm:$0xff]
    %v63 = vld [vmem:[%s2 + $0x48] sm:$0xff]
    %v64 = vld [vmem:[%s2 + $0x50] sm:$0xff]
    %v65 = vld [vmem:[%s2 + $0x58] sm:$0xff]
    %v66 = vld [vmem:[%s2 + $0x60] sm:$0xff]
    %v67 = vld [vmem:[%s2 + $0x68] sm:$0xff]
    %v68 = vld [vmem:[%s2 + $0x70] sm:$0xff]
    %v69 = vld [vmem:[%s2 + $0x78] sm:$0xff]
    %v70 = vld [vmem:[%s2 + $0x80] sm:$0xff]
    %v71 = vld [vmem:[%s2 + $0x88] sm:$0xff]
    %v72 = vld [vmem:[%s2 + $0x90] sm:$0xff]
    %v73 = vld [vmem:[%s2 + $0x98] sm:$0xff]
    %v74 = vld [vmem:[%s2 + $0xa0] sm:$0xff]
    %v75 = vld [vmem:[%s2 + $0xa8] sm:$0xff]
    %v76 = vld [vmem:[%s2 + $0xb0] sm:$0xff]
    %v77 = vld [vmem:[%s2 + $0xb8] sm:$0xff]
    %v78 = vld [vmem:[%s2 + $0xc0] sm:$0xff]
    %v79 = vld [vmem:[%s2 + $0xc8] sm:$0xff]
    %v80 = vld [vmem:[%s2 + $0xd0] sm:$0xff]
    %v81 = vld [vmem:[%s2 + $0xd8] sm:$0xff]
    %v82 = vld [vmem:[%s2 + $0xe0] sm:$0xff]
    %v83 = vld [vmem:[%s2 + $0xe8] sm:$0xff]
    %v84 = vld [vmem:[%s2 + $0xf0] sm:$0xff]
    %v85 = vld [vmem:[%s2 + $0xf8] sm:$0xff]
    %87 = vset.pattern.permute.xlu0 0
    %88 = vperm.xlu0 %87, %v54
    %v89 = vpop.permute.xlu0 %88
    %92 = vset.pattern.permute.xlu0 0
    %93 = vperm.xlu0 %92, %v55
    %v94 = vpop.permute.xlu0 %93
    %97 = vset.pattern.permute.xlu0 0
    %98 = vperm.xlu0 %97, %v56
    %v99 = vpop.permute.xlu0 %98
    %102 = vset.pattern.permute.xlu0 0
    %103 = vperm.xlu0 %102, %v57
    %v104 = vpop.permute.xlu0 %103
    %107 = vset.pattern.permute.xlu0 0
    %108 = vperm.xlu0 %107, %v58
    %v109 = vpop.permute.xlu0 %108
    %112 = vset.pattern.permute.xlu0 0
    %113 = vperm.xlu0 %112, %v59
    %v114 = vpop.permute.xlu0 %113
    %117 = vset.pattern.permute.xlu0 0
    %118 = vperm.xlu0 %117, %v60
    %v119 = vpop.permute.xlu0 %118
    %122 = vset.pattern.permute.xlu0 0
    %123 = vperm.xlu0 %122, %v61
    %v124 = vpop.permute.xlu0 %123
    %127 = vset.pattern.permute.xlu0 0
    %128 = vperm.xlu0 %127, %v62
    %v129 = vpop.permute.xlu0 %128
    %132 = vset.pattern.permute.xlu0 0
    %133 = vperm.xlu0 %132, %v63
    %v134 = vpop.permute.xlu0 %133
    %137 = vset.pattern.permute.xlu0 0
    %138 = vperm.xlu0 %137, %v64
    %v139 = vpop.permute.xlu0 %138
    %142 = vset.pattern.permute.xlu0 0
    %143 = vperm.xlu0 %142, %v65
    %v144 = vpop.permute.xlu0 %143
    %147 = vset.pattern.permute.xlu0 0
    %148 = vperm.xlu0 %147, %v66
    %v149 = vpop.permute.xlu0 %148
    %152 = vset.pattern.permute.xlu0 0
    %153 = vperm.xlu0 %152, %v67
    %v154 = vpop.permute.xlu0 %153
    %157 = vset.pattern.permute.xlu0 0
    %158 = vperm.xlu0 %157, %v68
    %v159 = vpop.permute.xlu0 %158
    %162 = vset.pattern.permute.xlu0 0
    %163 = vperm.xlu0 %162, %v69
    %v164 = vpop.permute.xlu0 %163
    %167 = vset.pattern.permute.xlu0 0
    %168 = vperm.xlu0 %167, %v70
    %v169 = vpop.permute.xlu0 %168
    %172 = vset.pattern.permute.xlu0 0
    %173 = vperm.xlu0 %172, %v71
    %v174 = vpop.permute.xlu0 %173
    %177 = vset.pattern.permute.xlu0 0
    %178 = vperm.xlu0 %177, %v72
    %v179 = vpop.permute.xlu0 %178
    %182 = vset.pattern.permute.xlu0 0
    %183 = vperm.xlu0 %182, %v73
    %v184 = vpop.permute.xlu0 %183
    %187 = vset.pattern.permute.xlu0 0
    %188 = vperm.xlu0 %187, %v74
    %v189 = vpop.permute.xlu0 %188
    %192 = vset.pattern.permute.xlu0 0
    %193 = vperm.xlu0 %192, %v75
    %v194 = vpop.permute.xlu0 %193
    %197 = vset.pattern.permute.xlu0 0
    %198 = vperm.xlu0 %197, %v76
    %v199 = vpop.permute.xlu0 %198
    %202 = vset.pattern.permute.xlu0 0
    %203 = vperm.xlu0 %202, %v77
    %v204 = vpop.permute.xlu0 %203
    %207 = vset.pattern.permute.xlu0 0
    %208 = vperm.xlu0 %207, %v78
    %v209 = vpop.permute.xlu0 %208
    %212 = vset.pattern.permute.xlu0 0
    %213 = vperm.xlu0 %212, %v79
    %v214 = vpop.permute.xlu0 %213
    %217 = vset.pattern.permute.xlu0 0
    %218 = vperm.xlu0 %217, %v80
    %v219 = vpop.permute.xlu0 %218
    %222 = vset.pattern.permute.xlu0 0
    %223 = vperm.xlu0 %222, %v81
    %v224 = vpop.permute.xlu0 %223
    %227 = vset.pattern.permute.xlu0 0
    %228 = vperm.xlu0 %227, %v82
    %v229 = vpop.permute.xlu0 %228
    %232 = vset.pattern.permute.xlu0 0
    %233 = vperm.xlu0 %232, %v83
    %v234 = vpop.permute.xlu0 %233
    %237 = vset.pattern.permute.xlu0 0
    %238 = vperm.xlu0 %237, %v84
    %v239 = vpop.permute.xlu0 %238
    %242 = vset.pattern.permute.xlu0 0
    %243 = vperm.xlu0 %242, %v85
    %v244 = vpop.permute.xlu0 %243
    %v278 = vunpack.c.l.b16 %v22
    %v279 = vunpack.c.l.b16 %v23
    %v280 = vunpack.c.l.b16 %v24
    %v281 = vunpack.c.l.b16 %v25
    %v282 = vunpack.c.l.b16 %v26
    %v283 = vunpack.c.l.b16 %v27
    %v284 = vunpack.c.l.b16 %v28
    %v285 = vunpack.c.l.b16 %v29
    %v286 = vunpack.c.l.b16 %v30
    %v287 = vunpack.c.l.b16 %v31
    %v288 = vunpack.c.l.b16 %v32
    %v289 = vunpack.c.l.b16 %v33
    %v290 = vunpack.c.l.b16 %v34
    %v291 = vunpack.c.l.b16 %v35
    %v292 = vunpack.c.l.b16 %v36
    %v293 = vunpack.c.l.b16 %v37
    %v294 = vunpack.c.l.b16 %v38
    %v295 = vunpack.c.l.b16 %v39
    %v296 = vunpack.c.l.b16 %v40
    %v297 = vunpack.c.l.b16 %v41
    %v298 = vunpack.c.l.b16 %v42
    %v299 = vunpack.c.l.b16 %v43
    %v300 = vunpack.c.l.b16 %v44
    %v301 = vunpack.c.l.b16 %v45
    %v302 = vunpack.c.l.b16 %v46
    %v303 = vunpack.c.l.b16 %v47
    %v304 = vunpack.c.l.b16 %v48
    %v305 = vunpack.c.l.b16 %v49
    %v306 = vunpack.c.l.b16 %v50
    %v307 = vunpack.c.l.b16 %v51
    %v308 = vunpack.c.l.b16 %v52
    %v309 = vunpack.c.l.b16 %v53
    %v310 = vpack.c.b16 %v279, %v278
    %v311 = vpack.c.b16 %v281, %v280
    %v312 = vpack.c.b16 %v283, %v282
    %v313 = vpack.c.b16 %v285, %v284
    %v314 = vpack.c.b16 %v287, %v286
    %v315 = vpack.c.b16 %v289, %v288
    %v316 = vpack.c.b16 %v291, %v290
    %v317 = vpack.c.b16 %v293, %v292
    %v318 = vpack.c.b16 %v295, %v294
    %v319 = vpack.c.b16 %v297, %v296
    %v320 = vpack.c.b16 %v299, %v298
    %v321 = vpack.c.b16 %v301, %v300
    %v322 = vpack.c.b16 %v303, %v302
    %v323 = vpack.c.b16 %v305, %v304
    %v324 = vpack.c.b16 %v307, %v306
    %v325 = vpack.c.b16 %v309, %v308
    %vm326 = vcmask 261120
    %v328 = vsel %vm326, %v310, 0
    %v331 = vsel %vm326, %v311, 0
    %v334 = vsel %vm326, %v312, 0
    %v337 = vsel %vm326, %v313, 0
    %v340 = vsel %vm326, %v314, 0
    %v343 = vsel %vm326, %v315, 0
    %v346 = vsel %vm326, %v316, 0
    %v349 = vsel %vm326, %v317, 0
    %v352 = vsel %vm326, %v318, 0
    %v355 = vsel %vm326, %v319, 0
    %v358 = vsel %vm326, %v320, 0
    %v361 = vsel %vm326, %v321, 0
    %v364 = vsel %vm326, %v322, 0
    %v367 = vsel %vm326, %v323, 0
    %v370 = vsel %vm326, %v324, 0
    %v373 = vsel %vm326, %v325, 0
    %v376 = vsel %vm326, %v21, 0
    %378 = vmatpush.bf16.xpose.msra.mxu0 0
    %379 = vmatpush.bf16.xpose.msra.mxu0 0
    %380 = vmatpush.bf16.xpose.msra.mxu0 0
    %381 = vmatpush.bf16.xpose.msra.mxu0 0
    %382 = vmatpush.bf16.xpose.msra.mxu0 0
    %383 = vmatpush.bf16.xpose.msra.mxu0 0
    %384 = vmatpush.bf16.xpose.msra.mxu0 0
    %385 = vmatpush.bf16.xpose.msra.mxu0 %v376
    %386 = vmatmul.bf16.gmra.mxu0 %v328
    %v387 = vpop.f32.mrf.mxu0
    %v388 = vadd.f32 %v89, %v387
    %v389 = vpop.f32.mrf.mxu0
    %v390 = vadd.f32 %v94, %v389
    %391 = vmatmul.bf16.gmra.mxu0 %v331
    %v392 = vpop.f32.mrf.mxu0
    %v393 = vadd.f32 %v99, %v392
    %v394 = vpop.f32.mrf.mxu0
    %v395 = vadd.f32 %v104, %v394
    %396 = vmatmul.bf16.gmra.mxu0 %v334
    %v397 = vpop.f32.mrf.mxu0
    %v398 = vadd.f32 %v109, %v397
    %v399 = vpop.f32.mrf.mxu0
    %v400 = vadd.f32 %v114, %v399
    %401 = vmatmul.bf16.gmra.mxu0 %v337
    %v402 = vpop.f32.mrf.mxu0
    %v403 = vadd.f32 %v119, %v402
    %v404 = vpop.f32.mrf.mxu0
    %v405 = vadd.f32 %v124, %v404
    %406 = vmatmul.bf16.gmra.mxu0 %v340
    %v407 = vpop.f32.mrf.mxu0
    %v408 = vadd.f32 %v129, %v407
    %v409 = vpop.f32.mrf.mxu0
    %v410 = vadd.f32 %v134, %v409
    %411 = vmatmul.bf16.gmra.mxu0 %v343
    %v412 = vpop.f32.mrf.mxu0
    %v413 = vadd.f32 %v139, %v412
    %v414 = vpop.f32.mrf.mxu0
    %v415 = vadd.f32 %v144, %v414
    %416 = vmatmul.bf16.gmra.mxu0 %v346
    %v417 = vpop.f32.mrf.mxu0
    %v418 = vadd.f32 %v149, %v417
    %v419 = vpop.f32.mrf.mxu0
    %v420 = vadd.f32 %v154, %v419
    %421 = vmatmul.bf16.gmra.mxu0 %v349
    %v422 = vpop.f32.mrf.mxu0
    %v423 = vadd.f32 %v159, %v422
    %v424 = vpop.f32.mrf.mxu0
    %v425 = vadd.f32 %v164, %v424
    %426 = vmatmul.bf16.gmra.mxu0 %v352
    %v427 = vpop.f32.mrf.mxu0
    %v428 = vadd.f32 %v169, %v427
    %v429 = vpop.f32.mrf.mxu0
    %v430 = vadd.f32 %v174, %v429
    %431 = vmatmul.bf16.gmra.mxu0 %v355
    %v432 = vpop.f32.mrf.mxu0
    %v433 = vadd.f32 %v179, %v432
    %v434 = vpop.f32.mrf.mxu0
    %v435 = vadd.f32 %v184, %v434
    %436 = vmatmul.bf16.gmra.mxu0 %v358
    %v437 = vpop.f32.mrf.mxu0
    %v438 = vadd.f32 %v189, %v437
    %v439 = vpop.f32.mrf.mxu0
    %v440 = vadd.f32 %v194, %v439
    %441 = vmatmul.bf16.gmra.mxu0 %v361
    %v442 = vpop.f32.mrf.mxu0
    %v443 = vadd.f32 %v199, %v442
    %v444 = vpop.f32.mrf.mxu0
    %v445 = vadd.f32 %v204, %v444
    %446 = vmatmul.bf16.gmra.mxu0 %v364
    %v447 = vpop.f32.mrf.mxu0
    %v448 = vadd.f32 %v209, %v447
    %v449 = vpop.f32.mrf.mxu0
    %v450 = vadd.f32 %v214, %v449
    %451 = vmatmul.bf16.gmra.mxu0 %v367
    %v452 = vpop.f32.mrf.mxu0
    %v453 = vadd.f32 %v219, %v452
    %v454 = vpop.f32.mrf.mxu0
    %v455 = vadd.f32 %v224, %v454
    %456 = vmatmul.bf16.gmra.mxu0 %v370
    %v457 = vpop.f32.mrf.mxu0
    %v458 = vadd.f32 %v229, %v457
    %v459 = vpop.f32.mrf.mxu0
    %v460 = vadd.f32 %v234, %v459
    %461 = vmatmul.bf16.gmra.mxu0 %v373
    %v462 = vpop.f32.mrf.mxu0
    %v463 = vadd.f32 %v239, %v462
    %v464 = vpop.f32.mrf.mxu0
    %v465 = vadd.f32 %v244, %v464
    %466 = vdwg.mxu0
    %v467 = vtanh.pop %v388
    %v468 = vtanh.pop %v390
    %v469 = vtanh.pop %v393
    %v470 = vtanh.pop %v395
    %v471 = vtanh.pop %v398
    %v472 = vtanh.pop %v400
    %v473 = vtanh.pop %v403
    %v474 = vtanh.pop %v405
    %v475 = vtanh.pop %v408
    %v476 = vtanh.pop %v410
    %v477 = vtanh.pop %v413
    %v478 = vtanh.pop %v415
    %v479 = vtanh.pop %v418
    %v480 = vtanh.pop %v420
    %v481 = vtanh.pop %v423
    %v482 = vtanh.pop %v425
    %v483 = vtanh.pop %v428
    %v484 = vtanh.pop %v430
    %v485 = vtanh.pop %v433
    %v486 = vtanh.pop %v435
    %v487 = vtanh.pop %v438
    %v488 = vtanh.pop %v440
    %v489 = vtanh.pop %v443
    %v490 = vtanh.pop %v445
    %v491 = vtanh.pop %v448
    %v492 = vtanh.pop %v450
    %v493 = vtanh.pop %v453
    %v494 = vtanh.pop %v455
    %v495 = vtanh.pop %v458
    %v496 = vtanh.pop %v460
    %v497 = vtanh.pop %v463
    %v498 = vtanh.pop %v465
    %v499 = vld [vmem:[%s3] sm:$0xff]
    %v500 = vld [vmem:[%s3 + $0x8] sm:$0xff]
    %v501 = vld [vmem:[%s3 + $0x10] sm:$0xff]
    %v502 = vld [vmem:[%s3 + $0x18] sm:$0xff]
    %v503 = vld [vmem:[%s3 + $0x20] sm:$0xff]
    %v504 = vld [vmem:[%s3 + $0x28] sm:$0xff]
    %v505 = vld [vmem:[%s3 + $0x30] sm:$0xff]
    %v506 = vld [vmem:[%s3 + $0x38] sm:$0xff]
    %v507 = vld [vmem:[%s3 + $0x40] sm:$0xff]
    %v508 = vld [vmem:[%s3 + $0x48] sm:$0xff]
    %v509 = vld [vmem:[%s3 + $0x50] sm:$0xff]
    %v510 = vld [vmem:[%s3 + $0x58] sm:$0xff]
    %v511 = vld [vmem:[%s3 + $0x60] sm:$0xff]
    %v512 = vld [vmem:[%s3 + $0x68] sm:$0xff]
    %v513 = vld [vmem:[%s3 + $0x70] sm:$0xff]
    %v514 = vld [vmem:[%s3 + $0x78] sm:$0xff]
    %v515 = vld [vmem:[%s3 + $0x80] sm:$0xff]
    %v516 = vld [vmem:[%s3 + $0x88] sm:$0xff]
    %v517 = vld [vmem:[%s3 + $0x90] sm:$0xff]
    %v518 = vld [vmem:[%s3 + $0x98] sm:$0xff]
    %v519 = vld [vmem:[%s3 + $0xa0] sm:$0xff]
    %v520 = vld [vmem:[%s3 + $0xa8] sm:$0xff]
    %v521 = vld [vmem:[%s3 + $0xb0] sm:$0xff]
    %v522 = vld [vmem:[%s3 + $0xb8] sm:$0xff]
    %v523 = vld [vmem:[%s3 + $0xc0] sm:$0xff]
    %v524 = vld [vmem:[%s3 + $0xc8] sm:$0xff]
    %v525 = vld [vmem:[%s3 + $0xd0] sm:$0xff]
    %v526 = vld [vmem:[%s3 + $0xd8] sm:$0xff]
    %v527 = vld [vmem:[%s3 + $0xe0] sm:$0xff]
    %v528 = vld [vmem:[%s3 + $0xe8] sm:$0xff]
    %v529 = vld [vmem:[%s3 + $0xf0] sm:$0xff]
    %v530 = vld [vmem:[%s3 + $0xf8] sm:$0xff]
    %532 = vset.pattern.permute.xlu0 0
    %533 = vperm.xlu0 %532, %v499
    %v534 = vpop.permute.xlu0 %533
    %537 = vset.pattern.permute.xlu0 0
    %538 = vperm.xlu0 %537, %v500
    %v539 = vpop.permute.xlu0 %538
    %542 = vset.pattern.permute.xlu0 0
    %543 = vperm.xlu0 %542, %v501
    %v544 = vpop.permute.xlu0 %543
    %547 = vset.pattern.permute.xlu0 0
    %548 = vperm.xlu0 %547, %v502
    %v549 = vpop.permute.xlu0 %548
    %552 = vset.pattern.permute.xlu0 0
    %553 = vperm.xlu0 %552, %v503
    %v554 = vpop.permute.xlu0 %553
    %557 = vset.pattern.permute.xlu0 0
    %558 = vperm.xlu0 %557, %v504
    %v559 = vpop.permute.xlu0 %558
    %562 = vset.pattern.permute.xlu0 0
    %563 = vperm.xlu0 %562, %v505
    %v564 = vpop.permute.xlu0 %563
    %567 = vset.pattern.permute.xlu0 0
    %568 = vperm.xlu0 %567, %v506
    %v569 = vpop.permute.xlu0 %568
    %572 = vset.pattern.permute.xlu0 0
    %573 = vperm.xlu0 %572, %v507
    %v574 = vpop.permute.xlu0 %573
    %577 = vset.pattern.permute.xlu0 0
    %578 = vperm.xlu0 %577, %v508
    %v579 = vpop.permute.xlu0 %578
    %582 = vset.pattern.permute.xlu0 0
    %583 = vperm.xlu0 %582, %v509
    %v584 = vpop.permute.xlu0 %583
    %587 = vset.pattern.permute.xlu0 0
    %588 = vperm.xlu0 %587, %v510
    %v589 = vpop.permute.xlu0 %588
    %592 = vset.pattern.permute.xlu0 0
    %593 = vperm.xlu0 %592, %v511
    %v594 = vpop.permute.xlu0 %593
    %597 = vset.pattern.permute.xlu0 0
    %598 = vperm.xlu0 %597, %v512
    %v599 = vpop.permute.xlu0 %598
    %602 = vset.pattern.permute.xlu0 0
    %603 = vperm.xlu0 %602, %v513
    %v604 = vpop.permute.xlu0 %603
    %607 = vset.pattern.permute.xlu0 0
    %608 = vperm.xlu0 %607, %v514
    %v609 = vpop.permute.xlu0 %608
    %612 = vset.pattern.permute.xlu0 0
    %613 = vperm.xlu0 %612, %v515
    %v614 = vpop.permute.xlu0 %613
    %617 = vset.pattern.permute.xlu0 0
    %618 = vperm.xlu0 %617, %v516
    %v619 = vpop.permute.xlu0 %618
    %622 = vset.pattern.permute.xlu0 0
    %623 = vperm.xlu0 %622, %v517
    %v624 = vpop.permute.xlu0 %623
    %627 = vset.pattern.permute.xlu0 0
    %628 = vperm.xlu0 %627, %v518
    %v629 = vpop.permute.xlu0 %628
    %632 = vset.pattern.permute.xlu0 0
    %633 = vperm.xlu0 %632, %v519
    %v634 = vpop.permute.xlu0 %633
    %637 = vset.pattern.permute.xlu0 0
    %638 = vperm.xlu0 %637, %v520
    %v639 = vpop.permute.xlu0 %638
    %642 = vset.pattern.permute.xlu0 0
    %643 = vperm.xlu0 %642, %v521
    %v644 = vpop.permute.xlu0 %643
    %647 = vset.pattern.permute.xlu0 0
    %648 = vperm.xlu0 %647, %v522
    %v649 = vpop.permute.xlu0 %648
    %652 = vset.pattern.permute.xlu0 0
    %653 = vperm.xlu0 %652, %v523
    %v654 = vpop.permute.xlu0 %653
    %657 = vset.pattern.permute.xlu0 0
    %658 = vperm.xlu0 %657, %v524
    %v659 = vpop.permute.xlu0 %658
    %662 = vset.pattern.permute.xlu0 0
    %663 = vperm.xlu0 %662, %v525
    %v664 = vpop.permute.xlu0 %663
    %667 = vset.pattern.permute.xlu0 0
    %668 = vperm.xlu0 %667, %v526
    %v669 = vpop.permute.xlu0 %668
    %672 = vset.pattern.permute.xlu0 0
    %673 = vperm.xlu0 %672, %v527
    %v674 = vpop.permute.xlu0 %673
    %677 = vset.pattern.permute.xlu0 0
    %678 = vperm.xlu0 %677, %v528
    %v679 = vpop.permute.xlu0 %678
    %682 = vset.pattern.permute.xlu0 0
    %683 = vperm.xlu0 %682, %v529
    %v684 = vpop.permute.xlu0 %683
    %687 = vset.pattern.permute.xlu0 0
    %688 = vperm.xlu0 %687, %v530
    %v689 = vpop.permute.xlu0 %688
    %v691 = vmul.f32 %v467, %v534
    %v692 = vmul.f32 %v468, %v539
    %v693 = vmul.f32 %v469, %v544
    %v694 = vmul.f32 %v470, %v549
    %v695 = vmul.f32 %v471, %v554
    %v696 = vmul.f32 %v472, %v559
    %v697 = vmul.f32 %v473, %v564
    %v698 = vmul.f32 %v474, %v569
    %v699 = vmul.f32 %v475, %v574
    %v700 = vmul.f32 %v476, %v579
    %v701 = vmul.f32 %v477, %v584
    %v702 = vmul.f32 %v478, %v589
    %v703 = vmul.f32 %v479, %v594
    %v704 = vmul.f32 %v480, %v599
    %v705 = vmul.f32 %v481, %v604
    %v706 = vmul.f32 %v482, %v609
    %v707 = vmul.f32 %v483, %v614
    %v708 = vmul.f32 %v484, %v619
    %v709 = vmul.f32 %v485, %v624
    %v710 = vmul.f32 %v486, %v629
    %v711 = vmul.f32 %v487, %v634
    %v712 = vmul.f32 %v488, %v639
    %v713 = vmul.f32 %v489, %v644
    %v714 = vmul.f32 %v490, %v649
    %v715 = vmul.f32 %v491, %v654
    %v716 = vmul.f32 %v492, %v659
    %v717 = vmul.f32 %v493, %v664
    %v718 = vmul.f32 %v494, %v669
    %v719 = vmul.f32 %v495, %v674
    %v720 = vmul.f32 %v496, %v679
    %v721 = vmul.f32 %v497, %v684
    %v722 = vmul.f32 %v498, %v689
    %vm723 = vcmask 130048
    %v724 = vsel %vm723, %v691, 0.0
    %v725 = vsel %vm723, %v692, 0.0
    %v726 = vadd.f32 %v724, %v725
    %v727 = vsel %vm723, %v693, 0.0
    %v728 = vadd.f32 %v726, %v727
    %v729 = vsel %vm723, %v694, 0.0
    %v730 = vadd.f32 %v728, %v729
    %v731 = vsel %vm723, %v695, 0.0
    %v732 = vadd.f32 %v730, %v731
    %v733 = vsel %vm723, %v696, 0.0
    %v734 = vadd.f32 %v732, %v733
    %v735 = vsel %vm723, %v697, 0.0
    %v736 = vadd.f32 %v734, %v735
    %v737 = vsel %vm723, %v698, 0.0
    %v738 = vadd.f32 %v736, %v737
    %v739 = vsel %vm723, %v699, 0.0
    %v740 = vadd.f32 %v738, %v739
    %v741 = vsel %vm723, %v700, 0.0
    %v742 = vadd.f32 %v740, %v741
    %v743 = vsel %vm723, %v701, 0.0
    %v744 = vadd.f32 %v742, %v743
    %v745 = vsel %vm723, %v702, 0.0
    %v746 = vadd.f32 %v744, %v745
    %v747 = vsel %vm723, %v703, 0.0
    %v748 = vadd.f32 %v746, %v747
    %v749 = vsel %vm723, %v704, 0.0
    %v750 = vadd.f32 %v748, %v749
    %v751 = vsel %vm723, %v705, 0.0
    %v752 = vadd.f32 %v750, %v751
    %v753 = vsel %vm723, %v706, 0.0
    %v754 = vadd.f32 %v752, %v753
    %v755 = vsel %vm723, %v707, 0.0
    %v756 = vadd.f32 %v754, %v755
    %v757 = vsel %vm723, %v708, 0.0
    %v758 = vadd.f32 %v756, %v757
    %v759 = vsel %vm723, %v709, 0.0
    %v760 = vadd.f32 %v758, %v759
    %v761 = vsel %vm723, %v710, 0.0
    %v762 = vadd.f32 %v760, %v761
    %v763 = vsel %vm723, %v711, 0.0
    %v764 = vadd.f32 %v762, %v763
    %v765 = vsel %vm723, %v712, 0.0
    %v766 = vadd.f32 %v764, %v765
    %v767 = vsel %vm723, %v713, 0.0
    %v768 = vadd.f32 %v766, %v767
    %v769 = vsel %vm723, %v714, 0.0
    %v770 = vadd.f32 %v768, %v769
    %v771 = vsel %vm723, %v715, 0.0
    %v772 = vadd.f32 %v770, %v771
    %v773 = vsel %vm723, %v716, 0.0
    %v774 = vadd.f32 %v772, %v773
    %v775 = vsel %vm723, %v717, 0.0
    %v776 = vadd.f32 %v774, %v775
    %v777 = vsel %vm723, %v718, 0.0
    %v778 = vadd.f32 %v776, %v777
    %v779 = vsel %vm723, %v719, 0.0
    %v780 = vadd.f32 %v778, %v779
    %v781 = vsel %vm723, %v720, 0.0
    %v782 = vadd.f32 %v780, %v781
    %v783 = vsel %vm723, %v721, 0.0
    %v784 = vadd.f32 %v782, %v783
    %v785 = vsel %vm723, %v722, 0.0
    %v786 = vadd.f32 %v784, %v785
    %v787 = vrot.slane %v786, 4
    %v788 = vadd.f32 %v786, %v787
    %v789 = vrot.slane %v788, 2
    %v790 = vadd.f32 %v788, %v789
    %v791 = vrot.slane %v790, 1
    %v792 = vadd.f32 %v790, %v791
    %vm793 = vcmask 122880
    %794 = vst.msk [vmem:[#allocation2] sm:$0x1] %vm793, %v792
    // Predicated region
    $region18: #{tpu_custom_call.1} parent=1 // pred_check
      _
    $region19: #{tpu_custom_call.1} parent=1 // pred_check_branch
      %796 = sbr.rel (0) target = $region21
    $region20: #{tpu_custom_call.1} parent=1 // pred_region
      %798 = vsyncadd [#allocation3], 0
      %s800 = sshll.u32 [#allocation2], 4
      %s801 = int_to_ptr.vmem [resolvable:$true] %s800
      %s802 = sshll.u32 %s4, 4
      %s803 = int_to_ptr.hbm [resolvable:$true] %s802
      %805 = dma.vmem_to_hbm [thread:$0]  %s801, 16, %s803, [#allocation3]
    $region21: #{tpu_custom_call.1} parent=1 // pred_fallthru
      _
    // Predicated region
    $region22: #{tpu_custom_call.1} parent=1 // pred_check
      _
    $region23: #{tpu_custom_call.1} parent=1 // pred_check_branch
      %807 = sbr.rel (0) target = $region25
    $region24: #{tpu_custom_call.1} parent=1 // pred_region
      %809 = dma.done [#allocation3], 16
    $region25: #{tpu_custom_call.1} parent=1 // pred_fallthru
      _
    %810 = vsyncpa [#allocation3], 1

</llo_original>
